<compile_context>
chip_gen: v6e
topology: v6e:2x2x1
jax: 0.10.0
libtpu: 0.0.40
codegen_flags: <defaults>
</compile_context>

<pallas_src>
import functools

import jax
import jax.numpy as jnp
from jax.experimental import pallas as pl
from jax.experimental.pallas import tpu as pltpu


def _residual_kernel(x_ref, w_ref, b_ref, o_ref, *, use_mxu):
    # x_ref: (bn, C, T)  batch block; channels on sublanes, spatial on lanes
    # w_ref: (C, C)      effective weight = conv_weight + I (residual folded in)
    # b_ref: (C, 1)      bias (f32), broadcast along lanes
    bn, C, _ = x_ref.shape
    w = w_ref[...]                                  # (C, C), same dtype as x
    b = b_ref[...].astype(jnp.float32)              # (C, 1)

    if use_mxu:
        for bi in range(bn):                        # static unroll, bn is small
            y = jnp.dot(w, x_ref[bi], preferred_element_type=jnp.float32)
            o_ref[bi] = (y + b).astype(o_ref.dtype)
    else:
        # Tiny C: the MXU would run at <1% utilization; do a VPU
        # broadcast-mul-add instead (unrolled over the static channel count).
        wf = w.astype(jnp.float32)
        for bi in range(bn):
            xf = x_ref[bi].astype(jnp.float32)      # (C, T)
            acc = b                                 # (C, 1) -> broadcasts to (C, T)
            for ci in range(C):
                acc = acc + wf[:, ci:ci + 1] * xf[ci:ci + 1, :]
            o_ref[bi] = acc.astype(o_ref.dtype)


def _choose_tiling(N, HW, C, itemsize, *,
                   vmem_budget=12 * 1024 * 1024,
                   target_tile_bytes=1 << 20):
    """Pick (bn, tile_hw): spatial tile targeting ~1 MiB of x per tile, and a
    batch-block factor when one tile covers the whole image.  Budget keeps
    2x-in + 2x-out double buffers + resident weight/bias under a conservative
    VMEM cap (safe on v7x's 64 MiB VMEM and v5e's smaller scoped default)."""
    hw_pad = pl.cdiv(HW, 128) * 128

    target_lanes = max(128, (target_tile_bytes // max(C * itemsize, 1) // 128) * 128)
    tile_hw = min(target_lanes, hw_pad)
    tile_hw = max(128, (tile_hw // 128) * 128)

    def fits(bn, t):
        # 2 in + 2 out double buffers + resident weight + bias
        return 4 * bn * C * t * itemsize + C * C * itemsize + C * 4 <= vmem_budget

    while tile_hw > 128 and not fits(1, tile_hw):
        tile_hw -= 128

    bn = 1
    if tile_hw == hw_pad:
        # One spatial tile covers the image: block batch elements together.
        limit = max(1, target_lanes // max(tile_hw, 1))
        for cand in range(min(N, limit), 0, -1):
            if N % cand == 0 and fits(cand, tile_hw):
                bn = cand
                break
    return bn, tile_hw


def residual_pointwise(x_nchw, weight, bias, *, tile_hw=None, batch_block=None):
    """input + Conv2d_1x1(input), fused in one Pallas kernel (NCHW kept).

    x_nchw : (N, C, H, W)
    weight : (C_out, C_in)  (PyTorch conv weight with the 1x1 kernel squeezed)
    bias   : (C_out,)
    """
    N, C, H, W = x_nchw.shape
    assert weight.shape == (C, C)
    HW = H * W

    # NCHW -> (N, C, H*W): a pure reshape, no transpose, no extra HBM traffic.
    x3 = x_nchw.reshape(N, C, HW)
    itemsize = jnp.dtype(x3.dtype).itemsize

    auto_bn, auto_tile = _choose_tiling(N, HW, C, itemsize)
    if tile_hw is None:
        tile_hw = auto_tile
    if batch_block is None:
        batch_block = auto_bn if tile_hw >= HW else 1
    bn = max(1, min(batch_block, N))
    if N % bn != 0:
        bn = 1

    use_mxu = C >= 32

    # Fold residual into the weight in f32 (avoids losing the +1 at low precision).
    w_eff = weight.astype(jnp.float32) + jnp.eye(C, dtype=jnp.float32)
    w_eff = w_eff.astype(x3.dtype)
    b2 = bias.reshape(C, 1).astype(jnp.float32)

    grid = (pl.cdiv(N, bn), pl.cdiv(HW, tile_hw))

    flops = 2 * N * HW * C * C
    bytes_accessed = 2 * N * C * HW * itemsize + C * C * itemsize + C * 4

    kernel = functools.partial(_residual_kernel, use_mxu=use_mxu)

    out3 = pl.pallas_call(
        kernel,
        out_shape=jax.ShapeDtypeStruct((N, C, HW), x3.dtype),
        grid_spec=pltpu.PrefetchScalarGridSpec(
            num_scalar_prefetch=0,
            grid=grid,
            in_specs=[
                pl.BlockSpec((bn, C, tile_hw), lambda n, j: (n, 0, j)),  # x tile
                pl.BlockSpec((C, C), lambda n, j: (0, 0)),               # weight (resident)
                pl.BlockSpec((C, 1), lambda n, j: (0, 0)),               # bias (resident)
            ],
            out_specs=pl.BlockSpec((bn, C, tile_hw), lambda n, j: (n, 0, j)),
        ),
        compiler_params=pltpu.CompilerParams(
            dimension_semantics=("parallel", "parallel")),
        cost_estimate=pl.CostEstimate(
            flops=flops, transcendentals=0, bytes_accessed=bytes_accessed),
    )(x3, w_eff, b2)

    return out3.reshape(N, C, H, W)


def _reference(x_nchw, weight, bias):
    # Pure-JAX reference of input + Conv2d_1x1(input), kept in NCHW.
    y = jnp.einsum('oc,nchw->nohw', weight, x_nchw) + bias[None, :, None, None]
    return x_nchw + y


if __name__ == "__main__":
    key = jax.random.PRNGKey(0)
    kx, kw, kb = jax.random.split(key, 3)

    N, C, H, W = 2, 4, 16, 16
    x = jax.random.normal(kx, (N, C, H, W), dtype=jnp.float32)
    # Deterministic "inner" parameters (Conv2d(C, C, kernel_size=1)).
    weight = jax.random.normal(kw, (C, C), dtype=jnp.float32) * 0.1
    bias = jax.random.normal(kb, (C,), dtype=jnp.float32) * 0.1

    out = residual_pointwise(x, weight, bias)
    out = jax.block_until_ready(out)

    ref = _reference(x, weight, bias)
    assert out.shape == x.shape and out.dtype == x.dtype
    assert jnp.allclose(out, ref, atol=1e-5, rtol=1e-5), "mismatch vs reference"

    print("KERNEL_OK")
</pallas_src>

<mosaic_0001>
module attributes {stable_mosaic.version = 11 : i64} {
  func.func @_residual_kernel(%arg0: i32, %arg1: i32, %arg2: memref<2x4x256xf32, #tpu.memory_space<vmem>>, %arg3: memref<4x4xf32, #tpu.memory_space<vmem>>, %arg4: memref<4x1xf32, #tpu.memory_space<vmem>>, %arg5: memref<2x4x256xf32, #tpu.memory_space<vmem>>) attributes {dimension_semantics = [#tpu.dimension_semantics<parallel>, #tpu.dimension_semantics<parallel>], iteration_bounds = array<i64: 1, 1>, scalar_prefetch = 0 : i64, scratch_operands = 0 : i64, tpu.core_type = #tpu.core_type<tc>, window_params = [{transform_indices = @transform_0, window_bounds = array<i64: 2, 4, 256>}, {pipeline_mode = #tpu.pipeline_mode<synchronous>, transform_indices = @transform_1, window_bounds = array<i64: 4, 4>}, {pipeline_mode = #tpu.pipeline_mode<synchronous>, transform_indices = @transform_2, window_bounds = array<i64: 4, 1>}, {transform_indices = @transform_3, window_bounds = array<i64: 2, 4, 256>}]} {
    %c0 = arith.constant 0 : index
    %c0_0 = arith.constant 0 : index
    %0 = vector.load %arg3[%c0, %c0_0] : memref<4x4xf32, #tpu.memory_space<vmem>>, vector<4x4xf32>
    %c0_1 = arith.constant 0 : index
    %c0_2 = arith.constant 0 : index
    %1 = vector.load %arg4[%c0_1, %c0_2] : memref<4x1xf32, #tpu.memory_space<vmem>>, vector<4x1xf32>
    %c0_3 = arith.constant 0 : index
    %c0_4 = arith.constant 0 : index
    %c0_5 = arith.constant 0 : index
    %2 = vector.load %arg2[%c0_3, %c0_4, %c0_5] : memref<2x4x256xf32, #tpu.memory_space<vmem>>, vector<1x4x256xf32>
    %3 = vector.shape_cast %2 : vector<1x4x256xf32> to vector<4x256xf32>
    %4 = vector.extract_strided_slice %0 {offsets = [0, 0], sizes = [4, 1], strides = [1, 1]} : vector<4x4xf32> to vector<4x1xf32>
    %5 = vector.extract_strided_slice %3 {offsets = [0, 0], sizes = [1, 256], strides = [1, 1]} : vector<4x256xf32> to vector<1x256xf32>
    %6 = vector.broadcast %4 : vector<4x1xf32> to vector<4x256xf32>
    %7 = vector.broadcast %5 : vector<1x256xf32> to vector<4x256xf32>
    %8 = arith.mulf %6, %7 : vector<4x256xf32>
    %9 = vector.broadcast %1 : vector<4x1xf32> to vector<4x256xf32>
    %10 = arith.addf %9, %8 : vector<4x256xf32>
    %11 = vector.extract_strided_slice %0 {offsets = [0, 1], sizes = [4, 1], strides = [1, 1]} : vector<4x4xf32> to vector<4x1xf32>
    %12 = vector.extract_strided_slice %3 {offsets = [1, 0], sizes = [1, 256], strides = [1, 1]} : vector<4x256xf32> to vector<1x256xf32>
    %13 = vector.broadcast %11 : vector<4x1xf32> to vector<4x256xf32>
    %14 = vector.broadcast %12 : vector<1x256xf32> to vector<4x256xf32>
    %15 = arith.mulf %13, %14 : vector<4x256xf32>
    %16 = arith.addf %10, %15 : vector<4x256xf32>
    %17 = vector.extract_strided_slice %0 {offsets = [0, 2], sizes = [4, 1], strides = [1, 1]} : vector<4x4xf32> to vector<4x1xf32>
    %18 = vector.extract_strided_slice %3 {offsets = [2, 0], sizes = [1, 256], strides = [1, 1]} : vector<4x256xf32> to vector<1x256xf32>
    %19 = vector.broadcast %17 : vector<4x1xf32> to vector<4x256xf32>
    %20 = vector.broadcast %18 : vector<1x256xf32> to vector<4x256xf32>
    %21 = arith.mulf %19, %20 : vector<4x256xf32>
    %22 = arith.addf %16, %21 : vector<4x256xf32>
    %23 = vector.extract_strided_slice %0 {offsets = [0, 3], sizes = [4, 1], strides = [1, 1]} : vector<4x4xf32> to vector<4x1xf32>
    %24 = vector.extract_strided_slice %3 {offsets = [3, 0], sizes = [1, 256], strides = [1, 1]} : vector<4x256xf32> to vector<1x256xf32>
    %25 = vector.broadcast %23 : vector<4x1xf32> to vector<4x256xf32>
    %26 = vector.broadcast %24 : vector<1x256xf32> to vector<4x256xf32>
    %27 = arith.mulf %25, %26 : vector<4x256xf32>
    %28 = arith.addf %22, %27 : vector<4x256xf32>
    %c0_6 = arith.constant 0 : index
    %c0_7 = arith.constant 0 : index
    %c0_8 = arith.constant 0 : index
    %29 = vector.load %arg5[%c0_6, %c0_7, %c0_8] : memref<2x4x256xf32, #tpu.memory_space<vmem>>, vector<1x4x256xf32>
    %30 = vector.shape_cast %29 : vector<1x4x256xf32> to vector<4x256xf32>
    %31 = vector.shape_cast %28 : vector<4x256xf32> to vector<1x4x256xf32>
    tpu.vector_store %arg5[%c0_6, %c0_7, %c0_8], %31 {strides = array<i32>} : memref<2x4x256xf32, #tpu.memory_space<vmem>>, vector<1x4x256xf32>,
    %c1 = arith.constant 1 : index
    %c0_9 = arith.constant 0 : index
    %c0_10 = arith.constant 0 : index
    %32 = vector.load %arg2[%c1, %c0_9, %c0_10] : memref<2x4x256xf32, #tpu.memory_space<vmem>>, vector<1x4x256xf32>
    %33 = vector.shape_cast %32 : vector<1x4x256xf32> to vector<4x256xf32>
    %34 = vector.extract_strided_slice %0 {offsets = [0, 0], sizes = [4, 1], strides = [1, 1]} : vector<4x4xf32> to vector<4x1xf32>
    %35 = vector.extract_strided_slice %33 {offsets = [0, 0], sizes = [1, 256], strides = [1, 1]} : vector<4x256xf32> to vector<1x256xf32>
    %36 = vector.broadcast %34 : vector<4x1xf32> to vector<4x256xf32>
    %37 = vector.broadcast %35 : vector<1x256xf32> to vector<4x256xf32>
    %38 = arith.mulf %36, %37 : vector<4x256xf32>
    %39 = vector.broadcast %1 : vector<4x1xf32> to vector<4x256xf32>
    %40 = arith.addf %39, %38 : vector<4x256xf32>
    %41 = vector.extract_strided_slice %0 {offsets = [0, 1], sizes = [4, 1], strides = [1, 1]} : vector<4x4xf32> to vector<4x1xf32>
    %42 = vector.extract_strided_slice %33 {offsets = [1, 0], sizes = [1, 256], strides = [1, 1]} : vector<4x256xf32> to vector<1x256xf32>
    %43 = vector.broadcast %41 : vector<4x1xf32> to vector<4x256xf32>
    %44 = vector.broadcast %42 : vector<1x256xf32> to vector<4x256xf32>
    %45 = arith.mulf %43, %44 : vector<4x256xf32>
    %46 = arith.addf %40, %45 : vector<4x256xf32>
    %47 = vector.extract_strided_slice %0 {offsets = [0, 2], sizes = [4, 1], strides = [1, 1]} : vector<4x4xf32> to vector<4x1xf32>
    %48 = vector.extract_strided_slice %33 {offsets = [2, 0], sizes = [1, 256], strides = [1, 1]} : vector<4x256xf32> to vector<1x256xf32>
    %49 = vector.broadcast %47 : vector<4x1xf32> to vector<4x256xf32>
    %50 = vector.broadcast %48 : vector<1x256xf32> to vector<4x256xf32>
    %51 = arith.mulf %49, %50 : vector<4x256xf32>
    %52 = arith.addf %46, %51 : vector<4x256xf32>
    %53 = vector.extract_strided_slice %0 {offsets = [0, 3], sizes = [4, 1], strides = [1, 1]} : vector<4x4xf32> to vector<4x1xf32>
    %54 = vector.extract_strided_slice %33 {offsets = [3, 0], sizes = [1, 256], strides = [1, 1]} : vector<4x256xf32> to vector<1x256xf32>
    %55 = vector.broadcast %53 : vector<4x1xf32> to vector<4x256xf32>
    %56 = vector.broadcast %54 : vector<1x256xf32> to vector<4x256xf32>
    %57 = arith.mulf %55, %56 : vector<4x256xf32>
    %58 = arith.addf %52, %57 : vector<4x256xf32>
    %c1_11 = arith.constant 1 : index
    %c0_12 = arith.constant 0 : index
    %c0_13 = arith.constant 0 : index
    %59 = vector.load %arg5[%c1_11, %c0_12, %c0_13] : memref<2x4x256xf32, #tpu.memory_space<vmem>>, vector<1x4x256xf32>
    %60 = vector.shape_cast %59 : vector<1x4x256xf32> to vector<4x256xf32>
    %61 = vector.shape_cast %58 : vector<4x256xf32> to vector<1x4x256xf32>
    tpu.vector_store %arg5[%c1_11, %c0_12, %c0_13], %61 {strides = array<i32>} : memref<2x4x256xf32, #tpu.memory_space<vmem>>, vector<1x4x256xf32>,
    return
  }
  func.func @transform_0(%arg0: i32, %arg1: i32) -> (i32, i32, i32) {
    %c0_i32 = arith.constant 0 : i32
    %c0_i32_0 = arith.constant 0 : i32
    return %arg0, %c0_i32, %arg1 : i32, i32, i32
  }
  func.func @transform_1(%arg0: i32, %arg1: i32) -> (i32, i32) {
    %c0_i32 = arith.constant 0 : i32
    %c0_i32_0 = arith.constant 0 : i32
    %c0_i32_1 = arith.constant 0 : i32
    return %c0_i32, %c0_i32_0 : i32, i32
  }
  func.func @transform_2(%arg0: i32, %arg1: i32) -> (i32, i32) {
    %c0_i32 = arith.constant 0 : i32
    %c0_i32_0 = arith.constant 0 : i32
    %c0_i32_1 = arith.constant 0 : i32
    return %c0_i32, %c0_i32_0 : i32, i32
  }
  func.func @transform_3(%arg0: i32, %arg1: i32) -> (i32, i32, i32) {
    %c0_i32 = arith.constant 0 : i32
    %c0_i32_0 = arith.constant 0 : i32
    return %arg0, %c0_i32, %arg1 : i32, i32, i32
  }
}

</mosaic_0001>

<llo_original>
// kernel: tpu_custom_call.1
$region0: #{tpu_custom_call.1}
  #allocation0 [shape = 'u32[]', space=smem, size = 0x4, offset = 0x4, fixed_abs, tag = 'smem constant byte address 0x4 - core index']
  #allocation1 [shape = 'u32[144,128]{1,0:T(1,128)}', space=vmem, size = 0x12000, scoped, tag = 'internal scratch']
  %s0 = inlined_call_operand.hbm [shape: f32[2,4,256], index: 0, kind: input, shape index: {}]
  %s1 = inlined_call_operand.vmem [shape: f32[4,4], index: 1, kind: input, shape index: {}]
  %s2 = inlined_call_operand.vmem [shape: f32[4,1], index: 2, kind: input, shape index: {}]
  %s3 = inlined_call_operand.hbm [shape: f32[2,4,256], index: 3, kind: output, shape index: {}]
  %s4 = sld [smem:[#allocation0]]
  $region26: #{tpu_custom_call.1} parent=0
    _
  %s6 = ssub.s32 1, %s4
  %s7 = scalar_select 0, %s6, %s4
  $region1: #{tpu_custom_call.1} parent=0
    #allocation2 [shape = 'u8[8192]{0}', space=vmem, size = 0x2000, scoped, tag = 'input window, operand 0, single buffered']
    #allocation3 [shape = 's32[1]{0}', space=sflag, size = 0x4, scoped, tag = 'scoped memory for tpu_custom_call.1']
    #allocation4 [shape = 's32[1]{0}', space=sflag, size = 0x4, scoped, tag = 'scoped memory for tpu_custom_call.1']
    #allocation5 [shape = 'u8[8192]{0}', space=vmem, size = 0x2000, scoped, tag = 'output window, operand 0, single buffered']
    %8 = vsyncpa [#allocation3], 0
    %9 = vsyncpa [#allocation4], 0
    // Predicated region
    $region2: #{tpu_custom_call.1} parent=1 // pred_check
      _
    $region3: #{tpu_custom_call.1} parent=1 // pred_check_branch
      %11 = sbr.rel (0) target = $region5
    $region4: #{tpu_custom_call.1} parent=1 // pred_region
      %s13 = ssub.s32 256, 256
      %14 = vsyncadd [#allocation3], %s13
      %s15 = sshll.u32 [#allocation2], 4
      %s16 = int_to_ptr.vmem [resolvable:$true] %s15
      %21 = dma.hbm_to_vmem [thread:$0]  %s0, 256, %s16, [#allocation3], 128, 128, 8
    $region5: #{tpu_custom_call.1} parent=1 // pred_fallthru
      _
    // Predicated region
    $region6: #{tpu_custom_call.1} parent=1 // pred_check
      _
    $region7: #{tpu_custom_call.1} parent=1 // pred_check_branch
      %23 = sbr.rel (0) target = $region9
    $region8: #{tpu_custom_call.1} parent=1 // pred_region
      _
    $region9: #{tpu_custom_call.1} parent=1 // pred_fallthru
      _
    // Predicated region
    $region10: #{tpu_custom_call.1} parent=1 // pred_check
      _
    $region11: #{tpu_custom_call.1} parent=1 // pred_check_branch
      %25 = sbr.rel (0) target = $region13
    $region12: #{tpu_custom_call.1} parent=1 // pred_region
      _
    $region13: #{tpu_custom_call.1} parent=1 // pred_fallthru
      _
    // Predicated region
    $region14: #{tpu_custom_call.1} parent=1 // pred_check
      _
    $region15: #{tpu_custom_call.1} parent=1 // pred_check_branch
      %27 = sbr.rel (0) target = $region17
    $region16: #{tpu_custom_call.1} parent=1 // pred_region
      %28 = dma.done [#allocation3], 256
    $region17: #{tpu_custom_call.1} parent=1 // pred_fallthru
      _
    %v29 = vld [vmem:[%s1] sm:$0xf]
    %v30 = vld [vmem:[%s2] sm:$0xf]
    %v31 = vld [vmem:[#allocation2] sm:$0xff]
    %33 = vset.pattern.permute.xlu0 0
    %34 = vperm.xlu0 %33, %v29
    %v35 = vpop.permute.xlu0 %34
    %v38 = vlaneseq
    %v39 = vshrl.u32 %v38, 7
    %v40 = vsub.s32 0, %v39
    %v41 = vrot.slane %v31, %v40
    %v42 = vlaneseq
    %v43 = vshrl.u32 %v42, 7
    %v44 = vsub.s32 4, %v43
    %v45 = vrot.slane %v31, %v44
    %v48 = vlaneseq
    %v49 = vshrl.u32 %v48, 7
    %v50 = vsub.s32 0, %v49
    %v51 = vrot.slane %v41, %v50
    %v52 = vlaneseq
    %v53 = vshrl.u32 %v52, 7
    %v54 = vsub.s32 0, %v53
    %v55 = vrot.slane %v45, %v54
    %v56 = vmul.f32 %v35, %v51
    %v57 = vmul.f32 %v35, %v55
    %59 = vset.pattern.permute.xlu0 0
    %60 = vperm.xlu0 %59, %v30
    %v61 = vpop.permute.xlu0 %60
    %v63 = vadd.f32 %v61, %v56
    %v64 = vadd.f32 %v61, %v57
    %65 = vset.pattern.permute.xlu0 1
    %66 = vperm.xlu0 %65, %v29
    %v67 = vpop.permute.xlu0 %66
    %v69 = vlaneseq
    %v70 = vshrl.u32 %v69, 7
    %v71 = vsub.s32 1, %v70
    %v72 = vrot.slane %v31, %v71
    %v73 = vlaneseq
    %v74 = vshrl.u32 %v73, 7
    %v75 = vsub.s32 5, %v74
    %v76 = vrot.slane %v31, %v75
    %v79 = vlaneseq
    %v80 = vshrl.u32 %v79, 7
    %v81 = vsub.s32 1, %v80
    %v82 = vrot.slane %v72, %v81
    %v83 = vlaneseq
    %v84 = vshrl.u32 %v83, 7
    %v85 = vsub.s32 1, %v84
    %v86 = vrot.slane %v76, %v85
    %v87 = vmul.f32 %v67, %v82
    %v88 = vmul.f32 %v67, %v86
    %v89 = vadd.f32 %v63, %v87
    %v90 = vadd.f32 %v64, %v88
    %91 = vset.pattern.permute.xlu0 2
    %92 = vperm.xlu0 %91, %v29
    %v93 = vpop.permute.xlu0 %92
    %v95 = vlaneseq
    %v96 = vshrl.u32 %v95, 7
    %v97 = vsub.s32 2, %v96
    %v98 = vrot.slane %v31, %v97
    %v99 = vlaneseq
    %v100 = vshrl.u32 %v99, 7
    %v101 = vsub.s32 6, %v100
    %v102 = vrot.slane %v31, %v101
    %v105 = vlaneseq
    %v106 = vshrl.u32 %v105, 7
    %v107 = vsub.s32 2, %v106
    %v108 = vrot.slane %v98, %v107
    %v109 = vlaneseq
    %v110 = vshrl.u32 %v109, 7
    %v111 = vsub.s32 2, %v110
    %v112 = vrot.slane %v102, %v111
    %v113 = vmul.f32 %v93, %v108
    %v114 = vmul.f32 %v93, %v112
    %v115 = vadd.f32 %v89, %v113
    %v116 = vadd.f32 %v90, %v114
    %117 = vset.pattern.permute.xlu0 3
    %118 = vperm.xlu0 %117, %v29
    %v119 = vpop.permute.xlu0 %118
    %v121 = vlaneseq
    %v122 = vshrl.u32 %v121, 7
    %v123 = vsub.s32 3, %v122
    %v124 = vrot.slane %v31, %v123
    %v125 = vlaneseq
    %v126 = vshrl.u32 %v125, 7
    %v127 = vsub.s32 7, %v126
    %v128 = vrot.slane %v31, %v127
    %v131 = vlaneseq
    %v132 = vshrl.u32 %v131, 7
    %v133 = vsub.s32 3, %v132
    %v134 = vrot.slane %v124, %v133
    %v135 = vlaneseq
    %v136 = vshrl.u32 %v135, 7
    %v137 = vsub.s32 3, %v136
    %v138 = vrot.slane %v128, %v137
    %v139 = vmul.f32 %v119, %v134
    %v140 = vmul.f32 %v119, %v138
    %v141 = vadd.f32 %v115, %v139
    %v142 = vadd.f32 %v116, %v140
    %v145 = vcombine.low %v141, %v142
    %147 = vst [vmem:[#allocation5] sm:$0xff] %v145
    %s148 = scalar_lea.vmem [#allocation2], 8
    %v149 = vld [vmem:[%s148] sm:$0xff]
    %v151 = vlaneseq
    %v152 = vshrl.u32 %v151, 7
    %v153 = vsub.s32 0, %v152
    %v154 = vrot.slane %v149, %v153
    %v155 = vlaneseq
    %v156 = vshrl.u32 %v155, 7
    %v157 = vsub.s32 4, %v156
    %v158 = vrot.slane %v149, %v157
    %v161 = vlaneseq
    %v162 = vshrl.u32 %v161, 7
    %v163 = vsub.s32 0, %v162
    %v164 = vrot.slane %v154, %v163
    %v165 = vlaneseq
    %v166 = vshrl.u32 %v165, 7
    %v167 = vsub.s32 0, %v166
    %v168 = vrot.slane %v158, %v167
    %v169 = vmul.f32 %v35, %v164
    %v170 = vmul.f32 %v35, %v168
    %v171 = vadd.f32 %v61, %v169
    %v172 = vadd.f32 %v61, %v170
    %v173 = vlaneseq
    %v174 = vshrl.u32 %v173, 7
    %v175 = vsub.s32 1, %v174
    %v176 = vrot.slane %v149, %v175
    %v177 = vlaneseq
    %v178 = vshrl.u32 %v177, 7
    %v179 = vsub.s32 5, %v178
    %v180 = vrot.slane %v149, %v179
    %v183 = vlaneseq
    %v184 = vshrl.u32 %v183, 7
    %v185 = vsub.s32 1, %v184
    %v186 = vrot.slane %v176, %v185
    %v187 = vlaneseq
    %v188 = vshrl.u32 %v187, 7
    %v189 = vsub.s32 1, %v188
    %v190 = vrot.slane %v180, %v189
    %v191 = vmul.f32 %v67, %v186
    %v192 = vmul.f32 %v67, %v190
    %v193 = vadd.f32 %v171, %v191
    %v194 = vadd.f32 %v172, %v192
    %v195 = vlaneseq
    %v196 = vshrl.u32 %v195, 7
    %v197 = vsub.s32 2, %v196
    %v198 = vrot.slane %v149, %v197
    %v199 = vlaneseq
    %v200 = vshrl.u32 %v199, 7
    %v201 = vsub.s32 6, %v200
    %v202 = vrot.slane %v149, %v201
    %v205 = vlaneseq
    %v206 = vshrl.u32 %v205, 7
    %v207 = vsub.s32 2, %v206
    %v208 = vrot.slane %v198, %v207
    %v209 = vlaneseq
    %v210 = vshrl.u32 %v209, 7
    %v211 = vsub.s32 2, %v210
    %v212 = vrot.slane %v202, %v211
    %v213 = vmul.f32 %v93, %v208
    %v214 = vmul.f32 %v93, %v212
    %v215 = vadd.f32 %v193, %v213
    %v216 = vadd.f32 %v194, %v214
    %v217 = vlaneseq
    %v218 = vshrl.u32 %v217, 7
    %v219 = vsub.s32 3, %v218
    %v220 = vrot.slane %v149, %v219
    %v221 = vlaneseq
    %v222 = vshrl.u32 %v221, 7
    %v223 = vsub.s32 7, %v222
    %v224 = vrot.slane %v149, %v223
    %v227 = vlaneseq
    %v228 = vshrl.u32 %v227, 7
    %v229 = vsub.s32 3, %v228
    %v230 = vrot.slane %v220, %v229
    %v231 = vlaneseq
    %v232 = vshrl.u32 %v231, 7
    %v233 = vsub.s32 3, %v232
    %v234 = vrot.slane %v224, %v233
    %v235 = vmul.f32 %v119, %v230
    %v236 = vmul.f32 %v119, %v234
    %v237 = vadd.f32 %v215, %v235
    %v238 = vadd.f32 %v216, %v236
    %v241 = vcombine.low %v237, %v238
    %s243 = scalar_lea.vmem [#allocation5], 8
    %244 = vst [vmem:[%s243] sm:$0xff] %v241
    // Predicated region
    $region18: #{tpu_custom_call.1} parent=1 // pred_check
      _
    $region19: #{tpu_custom_call.1} parent=1 // pred_check_branch
      %246 = sbr.rel (0) target = $region21
    $region20: #{tpu_custom_call.1} parent=1 // pred_region
      %s248 = ssub.s32 256, 256
      %249 = vsyncadd [#allocation4], %s248
      %s250 = sshll.u32 [#allocation5], 4
      %s251 = int_to_ptr.vmem [resolvable:$true] %s250
      %256 = dma.vmem_to_hbm [thread:$0]  %s251, 256, %s3, [#allocation4], 128, 128, 8
    $region21: #{tpu_custom_call.1} parent=1 // pred_fallthru
      _
    // Predicated region
    $region22: #{tpu_custom_call.1} parent=1 // pred_check
      _
    $region23: #{tpu_custom_call.1} parent=1 // pred_check_branch
      %258 = sbr.rel (0) target = $region25
    $region24: #{tpu_custom_call.1} parent=1 // pred_region
      %259 = dma.done [#allocation4], 256
    $region25: #{tpu_custom_call.1} parent=1 // pred_fallthru
      _
    %260 = vsyncpa [#allocation3], 1
    %261 = vsyncpa [#allocation4], 1

</llo_original>
